<compile_context>
chip_gen: v7x
topology: tpu7x:2x2x1
jax: 0.10.0
libtpu: 0.0.40
codegen_flags: <defaults>
</compile_context>

<pallas_src>
import functools

import jax
import jax.numpy as jnp
from jax.experimental import pallas as pl
from jax.experimental.pallas import tpu as pltpu


def _mag_equalizer_kernel(x_ref, w1_ref, b1_ref, w23_ref, b23_ref,
                          w4_ref, b4_ref, o_ref, *, compute_dtype):
    def mm(a, w_ref):
        # Matmul inputs optionally in bf16 (v6e/v7x MXU-native), accumulate f32.
        return jnp.dot(a.astype(compute_dtype), w_ref[...].astype(compute_dtype),
                       preferred_element_type=jnp.float32)

    x = x_ref[...].astype(jnp.float32)                      # (TB, in)

    # Linear(in, H) + Hardtanh   (bias add / clamp stay f32 on the VPU)
    h = mm(x, w1_ref) + b1_ref[...]
    h = jnp.clip(h, -1.0, 1.0)

    # Folded Linear(H, 2H) @ Linear(2H, H)  (no activation between them)
    h = mm(h, w23_ref) + b23_ref[...]
    h = jnp.clip(h, -1.0, 1.0)

    # Linear(H, in)
    out = mm(h, w4_ref) + b4_ref[...]
    o_ref[...] = out.astype(o_ref.dtype)


def _round_up(x, m):
    return ((x + m - 1) // m) * m


def _full_spec(shape):
    # Whole-array block for weights / biases. Constant index_map -> Pallas
    # does not re-DMA them across grid steps.
    nd = len(shape)
    return pl.BlockSpec(shape, lambda i, _nd=nd: (0,) * _nd)


def mag_equalizer_forward(x, params, *, batch_tile=1024, use_bf16_matmul=False):
    """x: (B, input_size) float32. params: dict with w1..w4 / b1..b4."""
    B, input_size = x.shape
    hidden = params["w1"].shape[1]

    # --- Fold the activation-free Linear2/Linear3 pair (exact up to f32 rounding).
    w23 = params["w2"] @ params["w3"]                     # (H, H)
    b23 = params["b2"] @ params["w3"] + params["b3"]      # (1, H)

    w1, b1 = params["w1"], params["b1"]
    w4, b4 = params["w4"], params["b4"]

    # --- Pick the effective batch tile:
    #   * large (amortize per-grid-step overhead),
    #   * multiple of 8 sublanes,
    #   * keep grid >= 2 so the "parallel" batch axis can shard across
    #     both v7x TensorCores.
    half = _round_up(pl.cdiv(B, 2), 8)
    tb = max(8, min(batch_tile, half))

    # Pad batch to a multiple of the tile (no divisibility requirement).
    Bp = _round_up(B, tb)
    if Bp != B:
        x = jnp.pad(x, ((0, Bp - B), (0, 0)))
    grid = (Bp // tb,)

    compute_dtype = jnp.bfloat16 if use_bf16_matmul else jnp.float32
    kernel = functools.partial(_mag_equalizer_kernel, compute_dtype=compute_dtype)

    out = pl.pallas_call(
        kernel,
        out_shape=jax.ShapeDtypeStruct((Bp, input_size), x.dtype),
        grid_spec=pltpu.PrefetchScalarGridSpec(
            num_scalar_prefetch=0,
            grid=grid,
            in_specs=[
                pl.BlockSpec((tb, input_size), lambda i: (i, 0)),   # x tile
                _full_spec(w1.shape), _full_spec(b1.shape),
                _full_spec(w23.shape), _full_spec(b23.shape),
                _full_spec(w4.shape), _full_spec(b4.shape),
            ],
            out_specs=pl.BlockSpec((tb, input_size), lambda i: (i, 0)),
        ),
        compiler_params=pltpu.CompilerParams(
            dimension_semantics=("parallel",)),
    )(x, w1, b1, w23, b23, w4, b4)

    return out[:B] if Bp != B else out


def init_params(key, input_size, hidden_size):
    """Deterministic init matching nn.Linear's U(-1/sqrt(fan_in), 1/sqrt(fan_in))."""
    dims = [
        (input_size, hidden_size),          # Linear 1
        (hidden_size, hidden_size * 2),     # Linear 2
        (hidden_size * 2, hidden_size),     # Linear 3
        (hidden_size, input_size),          # Linear 4
    ]
    params = {}
    for idx, (fan_in, fan_out) in enumerate(dims, start=1):
        key, kw, kb = jax.random.split(key, 3)
        bound = 1.0 / (fan_in ** 0.5)
        params[f"w{idx}"] = jax.random.uniform(
            kw, (fan_in, fan_out), jnp.float32, minval=-bound, maxval=bound)
        params[f"b{idx}"] = jax.random.uniform(
            kb, (1, fan_out), jnp.float32, minval=-bound, maxval=bound)
    return params


def reference_forward(x, params):
    """Unfused pure-JAX reference (matches the PyTorch graph op-for-op)."""
    h = jnp.clip(x @ params["w1"] + params["b1"], -1.0, 1.0)
    h = h @ params["w2"] + params["b2"]
    h = jnp.clip(h @ params["w3"] + params["b3"], -1.0, 1.0)
    return h @ params["w4"] + params["b4"]


if __name__ == "__main__":
    input_size = 16
    hidden_size = 32
    batch = 16

    key = jax.random.PRNGKey(0)
    key, kx = jax.random.split(key)
    x = jax.random.normal(kx, (batch, input_size), jnp.float32)
    params = init_params(key, input_size, hidden_size)

    out = mag_equalizer_forward(x, params)
    out = jax.block_until_ready(out)

    ref = reference_forward(x, params)
    assert out.shape == (batch, input_size)
    # Slightly looser tolerance: W2@W3 folding reassociates f32 arithmetic.
    assert jnp.allclose(out, ref, atol=1e-4, rtol=1e-4), "mismatch vs JAX reference"

    print("KERNEL_OK")
</pallas_src>

<mosaic_0001>
module attributes {stable_mosaic.version = 11 : i64} {
  func.func @_mag_equalizer_kernel(%arg0: i32, %arg1: memref<8x16xf32, #tpu.memory_space<vmem>>, %arg2: memref<16x32xf32, #tpu.memory_space<vmem>>, %arg3: memref<1x32xf32, #tpu.memory_space<vmem>>, %arg4: memref<32x32xf32, #tpu.memory_space<vmem>>, %arg5: memref<1x32xf32, #tpu.memory_space<vmem>>, %arg6: memref<32x16xf32, #tpu.memory_space<vmem>>, %arg7: memref<1x16xf32, #tpu.memory_space<vmem>>, %arg8: memref<8x16xf32, #tpu.memory_space<vmem>>) attributes {dimension_semantics = [#tpu.dimension_semantics<parallel>], iteration_bounds = array<i64: 2>, scalar_prefetch = 0 : i64, scratch_operands = 0 : i64, tpu.core_type = #tpu.core_type<tc>, window_params = [{transform_indices = @transform_0, window_bounds = array<i64: 8, 16>}, {pipeline_mode = #tpu.pipeline_mode<synchronous>, transform_indices = @transform_1, window_bounds = array<i64: 16, 32>}, {pipeline_mode = #tpu.pipeline_mode<synchronous>, transform_indices = @transform_2, window_bounds = array<i64: 1, 32>}, {pipeline_mode = #tpu.pipeline_mode<synchronous>, transform_indices = @transform_3, window_bounds = array<i64: 32, 32>}, {pipeline_mode = #tpu.pipeline_mode<synchronous>, transform_indices = @transform_4, window_bounds = array<i64: 1, 32>}, {pipeline_mode = #tpu.pipeline_mode<synchronous>, transform_indices = @transform_5, window_bounds = array<i64: 32, 16>}, {pipeline_mode = #tpu.pipeline_mode<synchronous>, transform_indices = @transform_6, window_bounds = array<i64: 1, 16>}, {transform_indices = @transform_7, window_bounds = array<i64: 8, 16>}]} {
    %c0 = arith.constant 0 : index
    %c0_0 = arith.constant 0 : index
    %0 = vector.load %arg1[%c0, %c0_0] : memref<8x16xf32, #tpu.memory_space<vmem>>, vector<8x16xf32>
    %c0_1 = arith.constant 0 : index
    %c0_2 = arith.constant 0 : index
    %1 = vector.load %arg2[%c0_1, %c0_2] : memref<16x32xf32, #tpu.memory_space<vmem>>, vector<16x32xf32>
    %cst = arith.constant dense<0.000000e+00> : vector<8x32xf32>
    %2 = tpu.matmul %0, %1, %cst {dimension_numbers = #tpu.dot_dimension_numbers<[1], [0], [0], [1], [0, 0, 1, 1], [], []>} : vector<8x16xf32>, vector<16x32xf32>, vector<8x32xf32> -> vector<8x32xf32>
    %c0_3 = arith.constant 0 : index
    %c0_4 = arith.constant 0 : index
    %3 = vector.load %arg3[%c0_3, %c0_4] : memref<1x32xf32, #tpu.memory_space<vmem>>, vector<1x32xf32>
    %4 = vector.broadcast %3 : vector<1x32xf32> to vector<8x32xf32>
    %5 = arith.addf %2, %4 : vector<8x32xf32>
    %cst_5 = arith.constant -1.000000e+00 : f32
    %cst_6 = arith.constant 1.000000e+00 : f32
    %6 = vector.broadcast %cst_5 : f32 to vector<8x32xf32>
    %7 = arith.maximumf %6, %5 : vector<8x32xf32>
    %8 = vector.broadcast %cst_6 : f32 to vector<8x32xf32>
    %9 = arith.minimumf %8, %7 : vector<8x32xf32>
    %c0_7 = arith.constant 0 : index
    %c0_8 = arith.constant 0 : index
    %10 = vector.load %arg4[%c0_7, %c0_8] : memref<32x32xf32, #tpu.memory_space<vmem>>, vector<32x32xf32>
    %cst_9 = arith.constant dense<0.000000e+00> : vector<8x32xf32>
    %11 = tpu.matmul %9, %10, %cst_9 {dimension_numbers = #tpu.dot_dimension_numbers<[1], [0], [0], [1], [0, 0, 1, 1], [], []>} : vector<8x32xf32>, vector<32x32xf32>, vector<8x32xf32> -> vector<8x32xf32>
    %c0_10 = arith.constant 0 : index
    %c0_11 = arith.constant 0 : index
    %12 = vector.load %arg5[%c0_10, %c0_11] : memref<1x32xf32, #tpu.memory_space<vmem>>, vector<1x32xf32>
    %13 = vector.broadcast %12 : vector<1x32xf32> to vector<8x32xf32>
    %14 = arith.addf %11, %13 : vector<8x32xf32>
    %cst_12 = arith.constant -1.000000e+00 : f32
    %cst_13 = arith.constant 1.000000e+00 : f32
    %15 = vector.broadcast %cst_12 : f32 to vector<8x32xf32>
    %16 = arith.maximumf %15, %14 : vector<8x32xf32>
    %17 = vector.broadcast %cst_13 : f32 to vector<8x32xf32>
    %18 = arith.minimumf %17, %16 : vector<8x32xf32>
    %c0_14 = arith.constant 0 : index
    %c0_15 = arith.constant 0 : index
    %19 = vector.load %arg6[%c0_14, %c0_15] : memref<32x16xf32, #tpu.memory_space<vmem>>, vector<32x16xf32>
    %cst_16 = arith.constant dense<0.000000e+00> : vector<8x16xf32>
    %20 = tpu.matmul %18, %19, %cst_16 {dimension_numbers = #tpu.dot_dimension_numbers<[1], [0], [0], [1], [0, 0, 1, 1], [], []>} : vector<8x32xf32>, vector<32x16xf32>, vector<8x16xf32> -> vector<8x16xf32>
    %c0_17 = arith.constant 0 : index
    %c0_18 = arith.constant 0 : index
    %21 = vector.load %arg7[%c0_17, %c0_18] : memref<1x16xf32, #tpu.memory_space<vmem>>, vector<1x16xf32>
    %22 = vector.broadcast %21 : vector<1x16xf32> to vector<8x16xf32>
    %23 = arith.addf %20, %22 : vector<8x16xf32>
    %c0_19 = arith.constant 0 : index
    %c0_20 = arith.constant 0 : index
    %24 = vector.load %arg8[%c0_19, %c0_20] : memref<8x16xf32, #tpu.memory_space<vmem>>, vector<8x16xf32>
    tpu.vector_store %arg8[%c0_19, %c0_20], %23 {strides = array<i32>} : memref<8x16xf32, #tpu.memory_space<vmem>>, vector<8x16xf32>,
    return
  }
  func.func @transform_0(%arg0: i32) -> (i32, i32) {
    %c0_i32 = arith.constant 0 : i32
    %c0_i32_0 = arith.constant 0 : i32
    return %arg0, %c0_i32 : i32, i32
  }
  func.func @transform_1(%arg0: i32) -> (i32, i32) {
    %c0_i32 = arith.constant 0 : i32
    %c0_i32_0 = arith.constant 0 : i32
    %c0_i32_1 = arith.constant 0 : i32
    return %c0_i32, %c0_i32_0 : i32, i32
  }
  func.func @transform_2(%arg0: i32) -> (i32, i32) {
    %c0_i32 = arith.constant 0 : i32
    %c0_i32_0 = arith.constant 0 : i32
    %c0_i32_1 = arith.constant 0 : i32
    return %c0_i32, %c0_i32_0 : i32, i32
  }
  func.func @transform_3(%arg0: i32) -> (i32, i32) {
    %c0_i32 = arith.constant 0 : i32
    %c0_i32_0 = arith.constant 0 : i32
    %c0_i32_1 = arith.constant 0 : i32
    return %c0_i32, %c0_i32_0 : i32, i32
  }
  func.func @transform_4(%arg0: i32) -> (i32, i32) {
    %c0_i32 = arith.constant 0 : i32
    %c0_i32_0 = arith.constant 0 : i32
    %c0_i32_1 = arith.constant 0 : i32
    return %c0_i32, %c0_i32_0 : i32, i32
  }
  func.func @transform_5(%arg0: i32) -> (i32, i32) {
    %c0_i32 = arith.constant 0 : i32
    %c0_i32_0 = arith.constant 0 : i32
    %c0_i32_1 = arith.constant 0 : i32
    return %c0_i32, %c0_i32_0 : i32, i32
  }
  func.func @transform_6(%arg0: i32) -> (i32, i32) {
    %c0_i32 = arith.constant 0 : i32
    %c0_i32_0 = arith.constant 0 : i32
    %c0_i32_1 = arith.constant 0 : i32
    return %c0_i32, %c0_i32_0 : i32, i32
  }
  func.func @transform_7(%arg0: i32) -> (i32, i32) {
    %c0_i32 = arith.constant 0 : i32
    %c0_i32_0 = arith.constant 0 : i32
    return %arg0, %c0_i32 : i32, i32
  }
}

</mosaic_0001>

<llo_original>
// kernel: tpu_custom_call.1
$region0: #{tpu_custom_call.1}
  #allocation0 [shape = 'u32[]', space=smem, size = 0x4, offset = 0x4, fixed_abs, tag = 'smem constant byte address 0x4 - core index']
  #allocation1 [shape = 'u32[144,128]{1,0:T(1,128)}', space=vmem, size = 0x12000, scoped, tag = 'internal scratch']
  %s0 = inlined_call_operand.vmem [shape: f32[16,16], index: 0, kind: input, shape index: {}]
  %s1 = inlined_call_operand.hbm [shape: f32[16,32], index: 1, kind: input, shape index: {}]
  %s2 = inlined_call_operand.vmem [shape: f32[1,32], index: 2, kind: input, shape index: {}]
  %s3 = inlined_call_operand.vmem [shape: f32[32,32], index: 3, kind: input, shape index: {}]
  %s4 = inlined_call_operand.vmem [shape: f32[1,32], index: 4, kind: input, shape index: {}]
  %s5 = inlined_call_operand.vmem [shape: f32[32,16], index: 5, kind: input, shape index: {}]
  %s6 = inlined_call_operand.vmem [shape: f32[1,16], index: 6, kind: input, shape index: {}]
  %s7 = inlined_call_operand.hbm [shape: f32[16,16], index: 7, kind: output, shape index: {}]
  %s8 = sld [smem:[#allocation0]]
  $region65: #{tpu_custom_call.1} parent=0
    _
  %s10 = ssub.s32 1, %s8
  %s11 = scalar_select 0, %s10, %s8
  $region1: #{tpu_custom_call.1} parent=0
    #allocation2 [shape = 'u8[8192]{0}', space=vmem, size = 0x2000, scoped, tag = 'input window, operand 1, single buffered']
    #allocation3 [shape = 's32[2]{0}', space=sflag, size = 0x8, scoped, tag = 'scoped memory for tpu_custom_call.1']
    #allocation4 [shape = 's32[2]{0}', space=sflag, size = 0x8, scoped, tag = 'scoped memory for tpu_custom_call.1']
    #allocation5 [shape = 'u8[8192]{0}', space=vmem, size = 0x2000, scoped, tag = 'output window, operand 0']
    %12 = vsyncpa [#allocation3], 0
    %13 = vsyncpa [#allocation4], 0
    %s14 = scalar_lea.sflag [#allocation4], 1
    %15 = vsyncpa %s14, 0
    loop: start=0, step=1, limit=4
    $region2: #{tpu_custom_call.1} parent=1 // loop_pre_header
      _
    $region3: #{tpu_custom_call.1} parent=1 // loop_header
      %s17 = sphi 0, %s21
      %p18 = scmp.ge.s32.totalorder %s17, 4
      %s27 = sphi 0, %s29
      %s30 = sphi 0, %s27
      %s31 = sphi 0, %s30
      %s47 = sphi 0, %s31
      %s51 = sphi 0, %s51
      %s53 = sphi 0, %s51
      %s54 = sphi 0, %s53
      %s68 = sphi 0, %s54
      %s72 = sphi 0, %s72
      %s74 = sphi 0, %s72
      %s75 = sphi 0, %s74
      %s89 = sphi 0, %s75
      %s93 = sphi 0, %s93
      %s95 = sphi 0, %s93
      %s96 = sphi 0, %s95
      %s110 = sphi 0, %s96
      %s114 = sphi 0, %s114
      %s116 = sphi 0, %s114
      %s117 = sphi 0, %s116
      %s131 = sphi 0, %s117
      %s135 = sphi 0, %s135
      %s137 = sphi 0, %s135
      %s138 = sphi 0, %s137
      %s152 = sphi 0, %s138
      %s156 = sphi 0, %s156
      %s158 = sphi 0, %s156
      %s159 = sphi 0, %s158
      %s173 = sphi 0, %s159
      %s179 = sphi 0, %s181
      %s182 = sphi 0, %s179
      %s183 = sphi 0, %s182
      %s199 = sphi 0, %s183
    $region4: #{tpu_custom_call.1} parent=1 // loop_header_branch
      %20 = sbr.rel (%p18) target = $region8
    $region5: #{tpu_custom_call.1} parent=1 // loop_body
      %s22 = ssub.s32 %s17, 1
      %s23 = ssub.s32 %s17, 2
      %s24 = sadd.s32 %s17, 1
      %s25 = ssub.s32 %s17, %s24
      %p26 = scmp.eq.s32.totalorder %s25, 0
      %s28 = sadd.s32 %s27, 1
      %s29 = scalar_select %p26, %s27, %s28
      %p32 = pneg %p26
      %p33 = scmp.eq.s32.totalorder %s17, 1
      %p34 = por %p32, %p33
      %p35 = scmp.ne.s32.totalorder %s27, %s30
      %p36 = scmp.eq.s32.totalorder %s17, 0
      %p37 = por %p35, %p36
      %p38 = scmp.ne.s32.totalorder %s27, %s30
      %p39 = scmp.eq.s32.totalorder %s22, 1
      %p40 = por %p38, %p39
      %p41 = scmp.ne.s32.totalorder %s30, %s31
      %p42 = scmp.eq.s32.totalorder %s22, 0
      %p43 = por %p41, %p42
      %p44 = scmp.ne.s32.totalorder %s30, %s31
      %p45 = scmp.eq.s32.totalorder %s23, 1
      %p46 = por %p44, %p45
      %p48 = scmp.ne.s32.totalorder %s31, %s47
      %p49 = scmp.eq.s32.totalorder %s23, 0
      %p50 = por %p48, %p49
      %s52 = sadd.s32 %s51, 1
      %p55 = scmp.eq.s32.totalorder %s17, 1
      %p56 = scmp.ne.s32.totalorder %s51, %s53
      %p57 = scmp.eq.s32.totalorder %s17, 0
      %p58 = por %p56, %p57
      %p59 = scmp.ne.s32.totalorder %s51, %s53
      %p60 = scmp.eq.s32.totalorder %s22, 1
      %p61 = por %p59, %p60
      %p62 = scmp.ne.s32.totalorder %s53, %s54
      %p63 = scmp.eq.s32.totalorder %s22, 0
      %p64 = por %p62, %p63
      %p65 = scmp.ne.s32.totalorder %s53, %s54
      %p66 = scmp.eq.s32.totalorder %s23, 1
      %p67 = por %p65, %p66
      %p69 = scmp.ne.s32.totalorder %s54, %s68
      %p70 = scmp.eq.s32.totalorder %s23, 0
      %p71 = por %p69, %p70
      %s73 = sadd.s32 %s72, 1
      %p76 = scmp.eq.s32.totalorder %s17, 1
      %p77 = scmp.ne.s32.totalorder %s72, %s74
      %p78 = scmp.eq.s32.totalorder %s17, 0
      %p79 = por %p77, %p78
      %p80 = scmp.ne.s32.totalorder %s72, %s74
      %p81 = scmp.eq.s32.totalorder %s22, 1
      %p82 = por %p80, %p81
      %p83 = scmp.ne.s32.totalorder %s74, %s75
      %p84 = scmp.eq.s32.totalorder %s22, 0
      %p85 = por %p83, %p84
      %p86 = scmp.ne.s32.totalorder %s74, %s75
      %p87 = scmp.eq.s32.totalorder %s23, 1
      %p88 = por %p86, %p87
      %p90 = scmp.ne.s32.totalorder %s75, %s89
      %p91 = scmp.eq.s32.totalorder %s23, 0
      %p92 = por %p90, %p91
      %s94 = sadd.s32 %s93, 1
      %p97 = scmp.eq.s32.totalorder %s17, 1
      %p98 = scmp.ne.s32.totalorder %s93, %s95
      %p99 = scmp.eq.s32.totalorder %s17, 0
      %p100 = por %p98, %p99
      %p101 = scmp.ne.s32.totalorder %s93, %s95
      %p102 = scmp.eq.s32.totalorder %s22, 1
      %p103 = por %p101, %p102
      %p104 = scmp.ne.s32.totalorder %s95, %s96
      %p105 = scmp.eq.s32.totalorder %s22, 0
      %p106 = por %p104, %p105
      %p107 = scmp.ne.s32.totalorder %s95, %s96
      %p108 = scmp.eq.s32.totalorder %s23, 1
      %p109 = por %p107, %p108
      %p111 = scmp.ne.s32.totalorder %s96, %s110
      %p112 = scmp.eq.s32.totalorder %s23, 0
      %p113 = por %p111, %p112
      %s115 = sadd.s32 %s114, 1
      %p118 = scmp.eq.s32.totalorder %s17, 1
      %p119 = scmp.ne.s32.totalorder %s114, %s116
      %p120 = scmp.eq.s32.totalorder %s17, 0
      %p121 = por %p119, %p120
      %p122 = scmp.ne.s32.totalorder %s114, %s116
      %p123 = scmp.eq.s32.totalorder %s22, 1
      %p124 = por %p122, %p123
      %p125 = scmp.ne.s32.totalorder %s116, %s117
      %p126 = scmp.eq.s32.totalorder %s22, 0
      %p127 = por %p125, %p126
      %p128 = scmp.ne.s32.totalorder %s116, %s117
      %p129 = scmp.eq.s32.totalorder %s23, 1
      %p130 = por %p128, %p129
      %p132 = scmp.ne.s32.totalorder %s117, %s131
      %p133 = scmp.eq.s32.totalorder %s23, 0
      %p134 = por %p132, %p133
      %s136 = sadd.s32 %s135, 1
      %p139 = scmp.eq.s32.totalorder %s17, 1
      %p140 = scmp.ne.s32.totalorder %s135, %s137
      %p141 = scmp.eq.s32.totalorder %s17, 0
      %p142 = por %p140, %p141
      %p143 = scmp.ne.s32.totalorder %s135, %s137
      %p144 = scmp.eq.s32.totalorder %s22, 1
      %p145 = por %p143, %p144
      %p146 = scmp.ne.s32.totalorder %s137, %s138
      %p147 = scmp.eq.s32.totalorder %s22, 0
      %p148 = por %p146, %p147
      %p149 = scmp.ne.s32.totalorder %s137, %s138
      %p150 = scmp.eq.s32.totalorder %s23, 1
      %p151 = por %p149, %p150
      %p153 = scmp.ne.s32.totalorder %s138, %s152
      %p154 = scmp.eq.s32.totalorder %s23, 0
      %p155 = por %p153, %p154
      %s157 = sadd.s32 %s156, 1
      %p160 = scmp.eq.s32.totalorder %s17, 1
      %p161 = scmp.ne.s32.totalorder %s156, %s158
      %p162 = scmp.eq.s32.totalorder %s17, 0
      %p163 = por %p161, %p162
      %p164 = scmp.ne.s32.totalorder %s156, %s158
      %p165 = scmp.eq.s32.totalorder %s22, 1
      %p166 = por %p164, %p165
      %p167 = scmp.ne.s32.totalorder %s158, %s159
      %p168 = scmp.eq.s32.totalorder %s22, 0
      %p169 = por %p167, %p168
      %p170 = scmp.ne.s32.totalorder %s158, %s159
      %p171 = scmp.eq.s32.totalorder %s23, 1
      %p172 = por %p170, %p171
      %p174 = scmp.ne.s32.totalorder %s159, %s173
      %p175 = scmp.eq.s32.totalorder %s23, 0
      %p176 = por %p174, %p175
      %s177 = ssub.s32 %s17, %s24
      %p178 = scmp.eq.s32.totalorder %s177, 0
      %s180 = sadd.s32 %s179, 1
      %s181 = scalar_select %p178, %s179, %s180
      %p184 = pneg %p178
      %p185 = scmp.eq.s32.totalorder %s17, 1
      %p186 = por %p184, %p185
      %p187 = scmp.ne.s32.totalorder %s179, %s182
      %p188 = scmp.eq.s32.totalorder %s17, 0
      %p189 = por %p187, %p188
      %p190 = scmp.ne.s32.totalorder %s179, %s182
      %p191 = scmp.eq.s32.totalorder %s22, 1
      %p192 = por %p190, %p191
      %p193 = scmp.ne.s32.totalorder %s182, %s183
      %p194 = scmp.eq.s32.totalorder %s22, 0
      %p195 = por %p193, %p194
      %p196 = scmp.ne.s32.totalorder %s182, %s183
      %p197 = scmp.eq.s32.totalorder %s23, 1
      %p198 = por %p196, %p197
      %p200 = scmp.ne.s32.totalorder %s183, %s199
      %p201 = scmp.eq.s32.totalorder %s23, 0
      %p202 = por %p200, %p201
      %p203 = scmp.le.s32.totalorder 1, %s17
      %p204 = scmp.lt.s32.totalorder %s17, 3
      %p205 = pnand %p203, %p204
      %p206 = pneg %p205
      // Predicated region
      $region9: #{tpu_custom_call.1} parent=5 // pred_check
        _
      $region10: #{tpu_custom_call.1} parent=5 // pred_check_branch
        %208 = sbr.rel (%p205) target = $region12
      $region11: #{tpu_custom_call.1} parent=5 // pred_region
        %s209 = ssub.s32 %s17, 1
        // Predicated region
        $region13: #{tpu_custom_call.1} parent=11 // pred_check
          %p210 = pneg %p64
        $region14: #{tpu_custom_call.1} parent=11 // pred_check_branch
          %212 = sbr.rel (%p210) target = $region16
        $region15: #{tpu_custom_call.1} parent=11 // pred_region
          %s214 = ssub.s32 256, 256
          %215 = vsyncadd [#allocation3], %s214
          %s216 = sshll.u32 [#allocation2], 4
          %s217 = int_to_ptr.vmem [resolvable:$true] %s216
          %222 = dma.hbm_to_vmem [thread:$0]  %s1, 256, %s217, [#allocation3], 128, 128, 8
        $region16: #{tpu_custom_call.1} parent=11 // pred_fallthru
          _
        // Predicated region
        $region17: #{tpu_custom_call.1} parent=11 // pred_check
          %p223 = pneg %p85
        $region18: #{tpu_custom_call.1} parent=11 // pred_check_branch
          %225 = sbr.rel (%p223) target = $region20
        $region19: #{tpu_custom_call.1} parent=11 // pred_region
          _
        $region20: #{tpu_custom_call.1} parent=11 // pred_fallthru
          _
        // Predicated region
        $region21: #{tpu_custom_call.1} parent=11 // pred_check
          %p226 = pneg %p106
        $region22: #{tpu_custom_call.1} parent=11 // pred_check_branch
          %228 = sbr.rel (%p226) target = $region24
        $region23: #{tpu_custom_call.1} parent=11 // pred_region
          _
        $region24: #{tpu_custom_call.1} parent=11 // pred_fallthru
          _
        // Predicated region
        $region25: #{tpu_custom_call.1} parent=11 // pred_check
          %p229 = pneg %p127
        $region26: #{tpu_custom_call.1} parent=11 // pred_check_branch
          %231 = sbr.rel (%p229) target = $region28
        $region27: #{tpu_custom_call.1} parent=11 // pred_region
          _
        $region28: #{tpu_custom_call.1} parent=11 // pred_fallthru
          _
        // Predicated region
        $region29: #{tpu_custom_call.1} parent=11 // pred_check
          %p232 = pneg %p148
        $region30: #{tpu_custom_call.1} parent=11 // pred_check_branch
          %234 = sbr.rel (%p232) target = $region32
        $region31: #{tpu_custom_call.1} parent=11 // pred_region
          _
        $region32: #{tpu_custom_call.1} parent=11 // pred_fallthru
          _
        // Predicated region
        $region33: #{tpu_custom_call.1} parent=11 // pred_check
          %p235 = pneg %p169
        $region34: #{tpu_custom_call.1} parent=11 // pred_check_branch
          %237 = sbr.rel (%p235) target = $region36
        $region35: #{tpu_custom_call.1} parent=11 // pred_region
          _
        $region36: #{tpu_custom_call.1} parent=11 // pred_fallthru
          _
      $region12: #{tpu_custom_call.1} parent=5 // pred_fallthru
        _
      %p238 = scmp.lt.s32.totalorder %s17, 2
      // Predicated region
      $region37: #{tpu_custom_call.1} parent=5 // pred_check
        %p239 = pneg %p238
      $region38: #{tpu_custom_call.1} parent=5 // pred_check_branch
        %241 = sbr.rel (%p239) target = $region40
      $region39: #{tpu_custom_call.1} parent=5 // pred_region
        // Predicated region
        $region41: #{tpu_custom_call.1} parent=39 // pred_check
          %p242 = pneg %p37
        $region42: #{tpu_custom_call.1} parent=39 // pred_check_branch
          %244 = sbr.rel (%p242) target = $region44
        $region43: #{tpu_custom_call.1} parent=39 // pred_region
          %p245 = scmp.lt.s32.totalorder %s17, 1
          %s246 = scalar_select %p245, %s17, 1
          %s247 = smul.addr %s246, 8
          %s248 = scalar_lea.vmem %s0, %s247
        $region44: #{tpu_custom_call.1} parent=39 // pred_fallthru
          _
      $region40: #{tpu_custom_call.1} parent=5 // pred_fallthru
        _
      %p249 = scmp.le.s32.totalorder 1, %s17
      %p250 = scmp.lt.s32.totalorder %s17, 3
      %p251 = pnand %p249, %p250
      %p252 = pneg %p251
      // Predicated region
      $region45: #{tpu_custom_call.1} parent=5 // pred_check
        _
      $region46: #{tpu_custom_call.1} parent=5 // pred_check_branch
        %254 = sbr.rel (%p251) target = $region48
      $region47: #{tpu_custom_call.1} parent=5 // pred_region
        %s255 = ssub.s32 %s17, 1
        // Predicated region
        $region49: #{tpu_custom_call.1} parent=47 // pred_check
          %p256 = pneg %p64
        $region50: #{tpu_custom_call.1} parent=47 // pred_check_branch
          %258 = sbr.rel (%p256) target = $region52
        $region51: #{tpu_custom_call.1} parent=47 // pred_region
          %259 = dma.done [#allocation3], 256
        $region52: #{tpu_custom_call.1} parent=47 // pred_fallthru
          _
        %p260 = scmp.lt.s32.totalorder %s22, 1
        %s261 = scalar_select %p260, %s22, 1
        %s262 = smul.addr %s261, 8
        %s263 = scalar_lea.vmem %s0, %s262
        %p264 = pneg %p43
        %p265 = pneg %p40
        %p266 = pneg %p64
        %p267 = pneg %p61
        %p268 = pneg %p85
        %p269 = pneg %p82
        %p270 = pneg %p106
        %p271 = pneg %p103
        %p272 = pneg %p127
        %p273 = pneg %p124
        %p274 = pneg %p148
        %p275 = pneg %p145
        %p276 = pneg %p169
        %p277 = pneg %p166
        %p278 = pneg %p195
        %p279 = pneg %p192
        %s280 = sand.u32 %s182, 1
        %s281 = scalar_lea.sflag [#allocation4], %s280
        %s282 = sand.u32 %s182, 1
        %s283 = smul.addr %s282, 8
        %s284 = scalar_lea.vmem [#allocation5], %s283
        %p285 = scmp.lt.s32.totalorder %s22, 1
        %s286 = scalar_select %p285, %s22, 1
        %s287 = smul.addr %s286, 8
        %s288 = scalar_lea.vmem %s0, %s287
        %v289 = vld [vmem:[%s288] sm:$0xff]
        %v290 = vld [vmem:[#allocation2] sm:$0xff]
        %v291 = vld [vmem:[#allocation2 + $0x8] sm:$0xff]
        %v292 = vld [vmem:[%s2] sm:$0x1]
        %v294 = vlaneseq
        %v295 = vshrl.u32 %v294, 7
        %v296 = vsub.s32 0, %v295
        %v297 = vrot.slane %v292, %v296
        %vm299 = vcmask 130048
        %v301 = vsel %vm299, %v289, 0
        %303 = vmatprep.subr.mxu0 0.0
        %304 = vmatpush1.msra.mxu0 %v290
        %305 = vmatprep.subr.mxu0 0.0
        %306 = vmatpush1.msra.mxu0 %v291
        %307 = vmatprep.subr.mxu0 0.0
        %308 = vmatpush1.msra.mxu0 0.0
        %309 = vmatprep.subr.mxu0 0.0
        %310 = vmatpush1.msra.mxu0 0.0
        %311 = vmatprep.subr.mxu0 0.0
        %312 = vmatpush1.msra.mxu0 0.0
        %313 = vmatprep.subr.mxu0 0.0
        %314 = vmatpush1.msra.mxu0 0.0
        %315 = vmatprep.subr.mxu0 0.0
        %316 = vmatpush1.msra.mxu0 0.0
        %317 = vmatprep.subr.mxu0 0.0
        %318 = vmatpush1.msra.mxu0 0.0
        %319 = vmatprep.subr.mxu0 0.0
        %320 = vmatpush1.msra.mxu0 0.0
        %321 = vmatprep.subr.mxu0 0.0
        %322 = vmatpush1.msra.mxu0 0.0
        %323 = vmatprep.subr.mxu0 0.0
        %324 = vmatpush1.msra.mxu0 0.0
        %325 = vmatprep.subr.mxu0 0.0
        %326 = vmatpush1.msra.mxu0 0.0
        %327 = vmatprep.subr.mxu0 0.0
        %328 = vmatpush1.msra.mxu0 0.0
        %329 = vmatprep.subr.mxu0 0.0
        %330 = vmatpush1.msra.mxu0 0.0
        %331 = vmatprep.subr.mxu0 0.0
        %332 = vmatpush1.msra.mxu0 0.0
        %333 = vmatprep.subr.mxu0 0.0
        %334 = vmatpush1.msra.mxu0 0.0
        %335 = vmatprep.subr.mxu0 0.0
        %336 = vmatpush1.msra.mxu0 0.0
        %337 = vmatprep.subr.mxu0 0.0
        %338 = vmatpush1.msra.mxu0 0.0
        %339 = vmatprep.subr.mxu0 0.0
        %340 = vmatpush1.msra.mxu0 0.0
        %341 = vmatprep.subr.mxu0 0.0
        %342 = vmatpush1.msra.mxu0 0.0
        %343 = vmatprep.subr.mxu0 0.0
        %344 = vmatpush1.msra.mxu0 0.0
        %345 = vmatprep.subr.mxu0 0.0
        %346 = vmatpush1.msra.mxu0 0.0
        %347 = vmatprep.subr.mxu0 0.0
        %348 = vmatpush1.msra.mxu0 0.0
        %349 = vmatprep.subr.mxu0 0.0
        %350 = vmatpush1.msra.mxu0 0.0
        %351 = vmatprep.subr.mxu0 0.0
        %352 = vmatpush1.msra.mxu0 0.0
        %353 = vmatprep.subr.mxu0 0.0
        %354 = vmatpush1.msra.mxu0 0.0
        %355 = vmatprep.subr.mxu0 0.0
        %356 = vmatpush1.msra.mxu0 0.0
        %357 = vmatprep.subr.mxu0 0.0
        %358 = vmatpush1.msra.mxu0 0.0
        %359 = vmatprep.subr.mxu0 0.0
        %360 = vmatpush1.msra.mxu0 0.0
        %361 = vmatprep.subr.mxu0 0.0
        %362 = vmatpush1.msra.mxu0 0.0
        %363 = vmatprep.subr.mxu0 0.0
        %364 = vmatpush1.msra.mxu0 0.0
        %365 = vmatprep.subr.mxu0 0.0
        %366 = vmatpush1.msra.mxu0 0.0
        %367 = vmatprep.mubr.f32.mxu0 0.0
        %368 = vmatmul.mubr.f32.gmra.mrb[0].mxu0 %v301
        %v369 = vpop.f32.mrb[0].mxu0
        %v370 = vadd.f32 %v297, %v369
        %v371 = vpop.f32.mrb[0].mxu0
        %372 = vdwg.mxu0
        %v373 = vmax.f32 %v370, -1.0
        %v374 = vmin.f32 %v373, 1.0
        %v375 = vld [vmem:[%s3] sm:$0xff]
        %v376 = vld [vmem:[%s3 + $0x8] sm:$0xff]
        %v377 = vld [vmem:[%s3 + $0x10] sm:$0xff]
        %v378 = vld [vmem:[%s3 + $0x18] sm:$0xff]
        %v379 = vld [vmem:[%s4] sm:$0x1]
        %v381 = vlaneseq
        %v382 = vshrl.u32 %v381, 7
        %v383 = vsub.s32 0, %v382
        %v384 = vrot.slane %v379, %v383
        %vm386 = vcmask 261120
        %v388 = vsel %vm386, %v374, 0
        %390 = vmatprep.subr.mxu0 0.0
        %391 = vmatpush1.msra.mxu0 %v375
        %392 = vmatprep.subr.mxu0 0.0
        %393 = vmatpush1.msra.mxu0 %v376
        %394 = vmatprep.subr.mxu0 0.0
        %395 = vmatpush1.msra.mxu0 %v377
        %396 = vmatprep.subr.mxu0 0.0
        %397 = vmatpush1.msra.mxu0 %v378
        %398 = vmatprep.subr.mxu0 0.0
        %399 = vmatpush1.msra.mxu0 0.0
        %400 = vmatprep.subr.mxu0 0.0
        %401 = vmatpush1.msra.mxu0 0.0
        %402 = vmatprep.subr.mxu0 0.0
        %403 = vmatpush1.msra.mxu0 0.0
        %404 = vmatprep.subr.mxu0 0.0
        %405 = vmatpush1.msra.mxu0 0.0
        %406 = vmatprep.subr.mxu0 0.0
        %407 = vmatpush1.msra.mxu0 0.0
        %408 = vmatprep.subr.mxu0 0.0
        %409 = vmatpush1.msra.mxu0 0.0
        %410 = vmatprep.subr.mxu0 0.0
        %411 = vmatpush1.msra.mxu0 0.0
        %412 = vmatprep.subr.mxu0 0.0
        %413 = vmatpush1.msra.mxu0 0.0
        %414 = vmatprep.subr.mxu0 0.0
        %415 = vmatpush1.msra.mxu0 0.0
        %416 = vmatprep.subr.mxu0 0.0
        %417 = vmatpush1.msra.mxu0 0.0
        %418 = vmatprep.subr.mxu0 0.0
        %419 = vmatpush1.msra.mxu0 0.0
        %420 = vmatprep.subr.mxu0 0.0
        %421 = vmatpush1.msra.mxu0 0.0
        %422 = vmatprep.subr.mxu0 0.0
        %423 = vmatpush1.msra.mxu0 0.0
        %424 = vmatprep.subr.mxu0 0.0
        %425 = vmatpush1.msra.mxu0 0.0
        %426 = vmatprep.subr.mxu0 0.0
        %427 = vmatpush1.msra.mxu0 0.0
        %428 = vmatprep.subr.mxu0 0.0
        %429 = vmatpush1.msra.mxu0 0.0
        %430 = vmatprep.subr.mxu0 0.0
        %431 = vmatpush1.msra.mxu0 0.0
        %432 = vmatprep.subr.mxu0 0.0
        %433 = vmatpush1.msra.mxu0 0.0
        %434 = vmatprep.subr.mxu0 0.0
        %435 = vmatpush1.msra.mxu0 0.0
        %436 = vmatprep.subr.mxu0 0.0
        %437 = vmatpush1.msra.mxu0 0.0
        %438 = vmatprep.subr.mxu0 0.0
        %439 = vmatpush1.msra.mxu0 0.0
        %440 = vmatprep.subr.mxu0 0.0
        %441 = vmatpush1.msra.mxu0 0.0
        %442 = vmatprep.subr.mxu0 0.0
        %443 = vmatpush1.msra.mxu0 0.0
        %444 = vmatprep.subr.mxu0 0.0
        %445 = vmatpush1.msra.mxu0 0.0
        %446 = vmatprep.subr.mxu0 0.0
        %447 = vmatpush1.msra.mxu0 0.0
        %448 = vmatprep.subr.mxu0 0.0
        %449 = vmatpush1.msra.mxu0 0.0
        %450 = vmatprep.subr.mxu0 0.0
        %451 = vmatpush1.msra.mxu0 0.0
        %452 = vmatprep.subr.mxu0 0.0
        %453 = vmatpush1.msra.mxu0 0.0
        %454 = vmatprep.mubr.f32.mxu0 0.0
        %455 = vmatmul.mubr.f32.gmra.mrb[0].mxu0 %v388
        %v456 = vpop.f32.mrb[0].mxu0
        %v457 = vadd.f32 %v384, %v456
        %v458 = vpop.f32.mrb[0].mxu0
        %459 = vdwg.mxu0
        %v460 = vmax.f32 %v457, -1.0
        %v461 = vmin.f32 %v460, 1.0
        %v462 = vld [vmem:[%s5] sm:$0xff]
        %v463 = vld [vmem:[%s5 + $0x8] sm:$0xff]
        %v464 = vld [vmem:[%s5 + $0x10] sm:$0xff]
        %v465 = vld [vmem:[%s5 + $0x18] sm:$0xff]
        %v466 = vld [vmem:[%s6] sm:$0x1]
        %v468 = vlaneseq
        %v469 = vshrl.u32 %v468, 7
        %v470 = vsub.s32 0, %v469
        %v471 = vrot.slane %v466, %v470
        %v474 = vsel %vm386, %v461, 0
        %476 = vmatprep.subr.mxu0 0.0
        %477 = vmatpush1.msra.mxu0 %v462
        %478 = vmatprep.subr.mxu0 0.0
        %479 = vmatpush1.msra.mxu0 %v463
        %480 = vmatprep.subr.mxu0 0.0
        %481 = vmatpush1.msra.mxu0 %v464
        %482 = vmatprep.subr.mxu0 0.0
        %483 = vmatpush1.msra.mxu0 %v465
        %484 = vmatprep.subr.mxu0 0.0
        %485 = vmatpush1.msra.mxu0 0.0
        %486 = vmatprep.subr.mxu0 0.0
        %487 = vmatpush1.msra.mxu0 0.0
        %488 = vmatprep.subr.mxu0 0.0
        %489 = vmatpush1.msra.mxu0 0.0
        %490 = vmatprep.subr.mxu0 0.0
        %491 = vmatpush1.msra.mxu0 0.0
        %492 = vmatprep.subr.mxu0 0.0
        %493 = vmatpush1.msra.mxu0 0.0
        %494 = vmatprep.subr.mxu0 0.0
        %495 = vmatpush1.msra.mxu0 0.0
        %496 = vmatprep.subr.mxu0 0.0
        %497 = vmatpush1.msra.mxu0 0.0
        %498 = vmatprep.subr.mxu0 0.0
        %499 = vmatpush1.msra.mxu0 0.0
        %500 = vmatprep.subr.mxu0 0.0
        %501 = vmatpush1.msra.mxu0 0.0
        %502 = vmatprep.subr.mxu0 0.0
        %503 = vmatpush1.msra.mxu0 0.0
        %504 = vmatprep.subr.mxu0 0.0
        %505 = vmatpush1.msra.mxu0 0.0
        %506 = vmatprep.subr.mxu0 0.0
        %507 = vmatpush1.msra.mxu0 0.0
        %508 = vmatprep.subr.mxu0 0.0
        %509 = vmatpush1.msra.mxu0 0.0
        %510 = vmatprep.subr.mxu0 0.0
        %511 = vmatpush1.msra.mxu0 0.0
        %512 = vmatprep.subr.mxu0 0.0
        %513 = vmatpush1.msra.mxu0 0.0
        %514 = vmatprep.subr.mxu0 0.0
        %515 = vmatpush1.msra.mxu0 0.0
        %516 = vmatprep.subr.mxu0 0.0
        %517 = vmatpush1.msra.mxu0 0.0
        %518 = vmatprep.subr.mxu0 0.0
        %519 = vmatpush1.msra.mxu0 0.0
        %520 = vmatprep.subr.mxu0 0.0
        %521 = vmatpush1.msra.mxu0 0.0
        %522 = vmatprep.subr.mxu0 0.0
        %523 = vmatpush1.msra.mxu0 0.0
        %524 = vmatprep.subr.mxu0 0.0
        %525 = vmatpush1.msra.mxu0 0.0
        %526 = vmatprep.subr.mxu0 0.0
        %527 = vmatpush1.msra.mxu0 0.0
        %528 = vmatprep.subr.mxu0 0.0
        %529 = vmatpush1.msra.mxu0 0.0
        %530 = vmatprep.subr.mxu0 0.0
        %531 = vmatpush1.msra.mxu0 0.0
        %532 = vmatprep.subr.mxu0 0.0
        %533 = vmatpush1.msra.mxu0 0.0
        %534 = vmatprep.subr.mxu0 0.0
        %535 = vmatpush1.msra.mxu0 0.0
        %536 = vmatprep.subr.mxu0 0.0
        %537 = vmatpush1.msra.mxu0 0.0
        %538 = vmatprep.subr.mxu0 0.0
        %539 = vmatpush1.msra.mxu0 0.0
        %540 = vmatprep.mubr.f32.mxu0 0.0
        %541 = vmatmul.mubr.f32.gmra.mrb[0].mxu0 %v474
        %v542 = vpop.f32.mrb[0].mxu0
        %v543 = vadd.f32 %v471, %v542
        %v544 = vpop.f32.mrb[0].mxu0
        %545 = vdwg.mxu0
        %546 = vst.msk [vmem:[%s284] sm:$0xff] %vm299, %v543
        %s547 = sand.u32 %s182, 1
        %s548 = scalar_lea.sflag [#allocation4], %s547
        %s549 = sand.u32 %s182, 1
        %s550 = smul.addr %s549, 8
        %s551 = scalar_lea.vmem [#allocation5], %s550
        // Predicated region
        $region53: #{tpu_custom_call.1} parent=47 // pred_check
          %p552 = pneg %p192
        $region54: #{tpu_custom_call.1} parent=47 // pred_check_branch
          %554 = sbr.rel (%p552) target = $region56
        $region55: #{tpu_custom_call.1} parent=47 // pred_region
          %s556 = ssub.s32 128, 128
          %557 = vsyncadd %s548, %s556
          %s558 = smul.addr %s22, 128
          %s559 = scalar_lea.hbm %s7, %s558
          %s561 = sshll.u32 %s551, 4
          %s562 = int_to_ptr.vmem [resolvable:$true] %s561
          %564 = dma.vmem_to_hbm [thread:$0]  %s562, 128, %s559, %s548
        $region56: #{tpu_custom_call.1} parent=47 // pred_fallthru
          _
      $region48: #{tpu_custom_call.1} parent=5 // pred_fallthru
        _
      %p565 = scmp.le.s32.totalorder 2, %s17
      // Predicated region
      $region57: #{tpu_custom_call.1} parent=5 // pred_check
        %p566 = pneg %p565
      $region58: #{tpu_custom_call.1} parent=5 // pred_check_branch
        %568 = sbr.rel (%p566) target = $region60
      $region59: #{tpu_custom_call.1} parent=5 // pred_region
        %s569 = ssub.s32 %s17, 2
        // Predicated region
        $region61: #{tpu_custom_call.1} parent=59 // pred_check
          %p570 = pneg %p198
        $region62: #{tpu_custom_call.1} parent=59 // pred_check_branch
          %572 = sbr.rel (%p570) target = $region64
        $region63: #{tpu_custom_call.1} parent=59 // pred_region
          %s573 = sand.u32 %s183, 1
          %s574 = scalar_lea.sflag [#allocation4], %s573
          %s575 = sand.u32 %s183, 1
          %s576 = smul.addr %s575, 8
          %s577 = scalar_lea.vmem [#allocation5], %s576
          %578 = dma.done %s574, 128
        $region64: #{tpu_custom_call.1} parent=59 // pred_fallthru
          _
      $region60: #{tpu_custom_call.1} parent=5 // pred_fallthru
        _
    $region6: #{tpu_custom_call.1} parent=1 // loop_footer
      %s21 = sadd.s32 1, %s17
    $region7: #{tpu_custom_call.1} parent=1 // loop_footer_branch
      %16 = sbr.rel target = $region3
    $region8: #{tpu_custom_call.1} parent=1 // loop_exit
      _
    %579 = vsyncpa [#allocation3], 1
    %s580 = scalar_lea.sflag [#allocation3], 1
    %581 = vsyncpa %s580, 1
    %582 = vsyncpa [#allocation4], 1
    %s583 = scalar_lea.sflag [#allocation4], 1
    %584 = vsyncpa %s583, 1

</llo_original>
